<compile_context>
chip_gen: v6e
topology: v6e:2x2x1
jax: 0.10.0
libtpu: 0.0.40
codegen_flags: <defaults>
</compile_context>

<pallas_src>
import math
from functools import partial

import jax
import jax.numpy as jnp
from jax import lax
from jax.experimental import pallas as pl
from jax.experimental.pallas import tpu as pltpu


# ----------------------------------------------------------------------------
# hardware-aware sizing helpers
# ----------------------------------------------------------------------------

def _detect_vmem_bytes():
    try:
        info = pltpu.get_tpu_info()
        for name in ("vmem_capacity_bytes", "vmem_size_bytes", "vmem_bytes"):
            try:
                v = int(getattr(info, name, 0) or 0)
            except Exception:
                v = 0
            if v > 0:
                return v
    except Exception:
        pass
    return 64 * 1024 * 1024   # conservative (v7x-sized) fallback


_VMEM_PHYS = _detect_vmem_bytes()
# Leave headroom for Mosaic's own scratch. v5e/v6e (128 MiB) get a large budget,
# v7x (64 MiB) a conservative one.
_VMEM_LIMIT = min(int(_VMEM_PHYS * 0.75), 100 * 1024 * 1024)
_BIG_VMEM = _VMEM_LIMIT >= 80 * 1024 * 1024

_MM_TM = 512 if _BIG_VMEM else 256
_MM_TN = 512 if _BIG_VMEM else 256
_MM_TK = 1024 if _BIG_VMEM else 512
_FUSED_TN = 512 if _BIG_VMEM else 256      # review: cap 256 on v7x's 64 MiB VMEM
_KV_TILE = 512 if _BIG_VMEM else 256


def _sublane_align(dtype):
    itemsize = jnp.dtype(dtype).itemsize
    return {4: 8, 2: 16, 1: 32}.get(itemsize, 8)


def _tile(n, target, align):
    """Largest `align`-multiple tile <= target that divides n (or n itself)."""
    if n <= target:
        return n
    t = (target // align) * align
    while t >= align:
        if n % t == 0:
            return t
        t -= align
    return n


def _cparams(dimension_semantics):
    return pltpu.CompilerParams(
        dimension_semantics=dimension_semantics,
        vmem_limit_bytes=_VMEM_LIMIT,
    )


# ----------------------------------------------------------------------------
# Tiled matmul (wo, w2): bf16 in, f32 accumulate
# ----------------------------------------------------------------------------

def _matmul_kernel(a_ref, b_ref, o_ref, acc_ref):
    @pl.when(pl.program_id(2) == 0)
    def _():
        acc_ref[...] = jnp.zeros_like(acc_ref)

    acc_ref[...] += jnp.dot(a_ref[...], b_ref[...],
                            preferred_element_type=jnp.float32)

    @pl.when(pl.program_id(2) == pl.num_programs(2) - 1)
    def _():
        o_ref[...] = acc_ref[...].astype(o_ref.dtype)


def pallas_matmul(a, b, out_dtype=jnp.bfloat16, tm=None, tn=None, tk=None):
    M, K = a.shape
    K2, N = b.shape
    assert K == K2
    tm = _tile(M, tm or _MM_TM, _sublane_align(a.dtype))
    tn = _tile(N, tn or _MM_TN, 128)
    tk = _tile(K, tk or _MM_TK, 128)
    grid = (M // tm, N // tn, K // tk)
    # TODO(synk): pipeline_mode=pl.Buffered(3) on the B operand for long K grids.
    return pl.pallas_call(
        _matmul_kernel,
        out_shape=jax.ShapeDtypeStruct((M, N), out_dtype),
        grid=grid,
        in_specs=[
            pl.BlockSpec((tm, tk), lambda i, j, k: (i, k)),
            pl.BlockSpec((tk, tn), lambda i, j, k: (k, j)),
        ],
        out_specs=pl.BlockSpec((tm, tn), lambda i, j, k: (i, j)),
        scratch_shapes=[pltpu.VMEM((tm, tn), jnp.float32)],
        compiler_params=_cparams(("parallel", "parallel", "arbitrary")),
        cost_estimate=pl.CostEstimate(
            flops=int(2 * M * N * K),
            transcendentals=0,
            bytes_accessed=int(M * K * a.dtype.itemsize
                               + K * N * b.dtype.itemsize
                               + M * N * jnp.dtype(out_dtype).itemsize),
        ),
    )(a, b)


# ----------------------------------------------------------------------------
# Fused RMSNorm + matmul (QKV projection, output head)
# xn is computed once per row tile (j == 0) and reused across the column axis.
# ----------------------------------------------------------------------------

def _rms_matmul_kernel(x_ref, g_ref, w_ref, o_ref, xn_ref, *, eps):
    @pl.when(pl.program_id(1) == 0)
    def _():
        x = x_ref[...].astype(jnp.float32)
        ms = jnp.mean(x * x, axis=-1, keepdims=True)
        xn_ref[...] = ((x * lax.rsqrt(ms + eps)) * g_ref[...]).astype(xn_ref.dtype)

    o_ref[...] = jnp.dot(xn_ref[...], w_ref[...],
                         preferred_element_type=jnp.float32).astype(o_ref.dtype)


def pallas_rmsnorm_matmul(x, gamma, w, eps, out_dtype=jnp.bfloat16,
                          tm=256, tn=None):
    M, D = x.shape
    D2, N = w.shape
    assert D == D2
    tm = _tile(M, tm, _sublane_align(x.dtype))
    tn = _tile(N, tn or _FUSED_TN, 128)
    grid = (M // tm, N // tn)
    # TODO(synk): K-tile the (D, tn) weight panel for very large D on v7x.
    return pl.pallas_call(
        partial(_rms_matmul_kernel, eps=eps),
        out_shape=jax.ShapeDtypeStruct((M, N), out_dtype),
        grid=grid,
        in_specs=[
            pl.BlockSpec((tm, D), lambda i, j: (i, 0)),
            pl.BlockSpec((1, D), lambda i, j: (0, 0)),
            pl.BlockSpec((D, tn), lambda i, j: (0, j)),
        ],
        out_specs=pl.BlockSpec((tm, tn), lambda i, j: (i, j)),
        scratch_shapes=[pltpu.VMEM((tm, D), w.dtype)],
        # j marked "arbitrary" so the xn scratch reuse is never split across cores.
        compiler_params=_cparams(("parallel", "arbitrary")),
        cost_estimate=pl.CostEstimate(
            flops=int(2 * M * D * N + 6 * M * D),
            transcendentals=int(M),
            bytes_accessed=int(M * D * x.dtype.itemsize + 4 * D
                               + D * N * w.dtype.itemsize
                               + M * N * jnp.dtype(out_dtype).itemsize),
        ),
    )(x, gamma.reshape(1, D).astype(jnp.float32), w)


# ----------------------------------------------------------------------------
# Fused RMSNorm + (w1, w3) + SwiGLU  ->  silu(xn @ w1) * (xn @ w3)
# ----------------------------------------------------------------------------

def _rms_swiglu_kernel(x_ref, g_ref, w1_ref, w3_ref, o_ref, xn_ref, *, eps):
    @pl.when(pl.program_id(1) == 0)
    def _():
        x = x_ref[...].astype(jnp.float32)
        ms = jnp.mean(x * x, axis=-1, keepdims=True)
        xn_ref[...] = ((x * lax.rsqrt(ms + eps)) * g_ref[...]).astype(xn_ref.dtype)

    xn = xn_ref[...]
    h1 = jnp.dot(xn, w1_ref[...], preferred_element_type=jnp.float32)
    h3 = jnp.dot(xn, w3_ref[...], preferred_element_type=jnp.float32)
    o_ref[...] = (h1 * jax.nn.sigmoid(h1) * h3).astype(o_ref.dtype)


def pallas_rms_swiglu(x, gamma, w1, w3, eps, out_dtype=jnp.bfloat16,
                      tm=256, tn=None):
    M, D = x.shape
    D2, H = w1.shape
    assert D == D2 and w3.shape == (D, H)
    tm = _tile(M, tm, _sublane_align(x.dtype))
    tn = _tile(H, tn or _FUSED_TN, 128)
    grid = (M // tm, H // tn)
    return pl.pallas_call(
        partial(_rms_swiglu_kernel, eps=eps),
        out_shape=jax.ShapeDtypeStruct((M, H), out_dtype),
        grid=grid,
        in_specs=[
            pl.BlockSpec((tm, D), lambda i, j: (i, 0)),
            pl.BlockSpec((1, D), lambda i, j: (0, 0)),
            pl.BlockSpec((D, tn), lambda i, j: (0, j)),
            pl.BlockSpec((D, tn), lambda i, j: (0, j)),
        ],
        out_specs=pl.BlockSpec((tm, tn), lambda i, j: (i, j)),
        scratch_shapes=[pltpu.VMEM((tm, D), w1.dtype)],
        compiler_params=_cparams(("parallel", "arbitrary")),
        cost_estimate=pl.CostEstimate(
            flops=int(4 * M * D * H + 10 * M * H + 6 * M * D),
            transcendentals=int(M * H + M),
            bytes_accessed=int(M * D * x.dtype.itemsize + 4 * D
                               + 2 * D * H * w1.dtype.itemsize
                               + M * H * jnp.dtype(out_dtype).itemsize),
        ),
    )(x, gamma.reshape(1, D).astype(jnp.float32), w1, w3)


# ----------------------------------------------------------------------------
# In-place KV cache update (Pallas + input_output_aliases, manual DMA)
# ----------------------------------------------------------------------------

def _kv_write_kernel(new_ref, cache_hbm_ref, out_hbm_ref, sem, *, start_pos):
    del cache_hbm_ref  # aliased with out_hbm_ref; existing contents stay in place
    b = pl.program_id(0)
    h = pl.program_id(1)
    s = new_ref.shape[0]
    cp = pltpu.make_async_copy(
        new_ref, out_hbm_ref.at[b, h, pl.ds(start_pos, s), :], sem)
    cp.start()
    cp.wait()


def pallas_kv_cache_update(new, cache, start_pos):
    """new: (B, Hkv, S, Dh) new-token K or V; cache: (Bmax, Hkv, Tmax, Dh)."""
    B, Hkv, S, Dh = new.shape
    return pl.pallas_call(
        partial(_kv_write_kernel, start_pos=start_pos),
        grid=(B, Hkv),
        in_specs=[
            pl.BlockSpec((None, None, S, Dh), lambda b, h: (b, h, 0, 0)),
            pl.BlockSpec(memory_space=pl.ANY),
        ],
        out_specs=pl.BlockSpec(memory_space=pl.ANY),
        out_shape=jax.ShapeDtypeStruct(cache.shape, cache.dtype),
        scratch_shapes=[pltpu.SemaphoreType.DMA],
        input_output_aliases={1: 0},
        compiler_params=pltpu.CompilerParams(
            dimension_semantics=("arbitrary", "arbitrary"),
            has_side_effects=True,
            vmem_limit_bytes=_VMEM_LIMIT),
        cost_estimate=pl.CostEstimate(
            flops=0, transcendentals=0,
            bytes_accessed=int(2 * new.size * new.dtype.itemsize)),
    )(new, cache)
    # TODO(synk): under jit, donate the cache buffers so the alias is truly
    # in-place (no defensive copy at the program boundary).


# ----------------------------------------------------------------------------
# Flash attention: grid (B, Hkv, q_tiles, kv_tiles), GQA folded into M,
# causal mask in-kernel, fully-masked KV blocks skipped (compute + DMA).
# ----------------------------------------------------------------------------

def _flash_kernel(q_ref, k_ref, v_ref, o_ref, m_sc, l_sc, acc_sc,
                  *, tq, tkv, n_rep, start_pos):
    qi = pl.program_id(2)
    kv = pl.program_id(3)

    @pl.when(kv == 0)
    def _():
        m_sc[...] = jnp.full_like(m_sc, -jnp.inf)
        l_sc[...] = jnp.zeros_like(l_sc)
        acc_sc[...] = jnp.zeros_like(acc_sc)

    q_pos_min = start_pos + qi * tq
    q_pos_max = start_pos + (qi + 1) * tq - 1
    block_needed = kv * tkv <= q_pos_max             # not fully masked
    block_full = (kv + 1) * tkv - 1 <= q_pos_min     # fully visible -> no mask

    def update(masked):
        q = q_ref[...]                               # (tq*n_rep, Dh), pre-scaled bf16
        k = k_ref[...]                               # (tkv, Dh)
        v = v_ref[...]
        s = lax.dot_general(q, k, (((1,), (1,)), ((), ())),
                            preferred_element_type=jnp.float32)
        if masked:
            rows, cols = s.shape
            # row ordering is (position, rep): position = row // n_rep
            q_pos = q_pos_min + lax.broadcasted_iota(jnp.int32, (rows, cols), 0) // n_rep
            k_pos = kv * tkv + lax.broadcasted_iota(jnp.int32, (rows, cols), 1)
            s = jnp.where(k_pos <= q_pos, s, jnp.float32(-1e30))
        m_prev = m_sc[...]
        m_new = jnp.maximum(m_prev, jnp.max(s, axis=-1, keepdims=True))
        alpha = jnp.exp(m_prev - m_new)
        p = jnp.exp(s - m_new)
        l_sc[...] = alpha * l_sc[...] + jnp.sum(p, axis=-1, keepdims=True)
        acc_sc[...] = alpha * acc_sc[...] + jnp.dot(
            p.astype(v.dtype), v, preferred_element_type=jnp.float32)
        m_sc[...] = m_new

    @pl.when(jnp.logical_and(block_needed, block_full))
    def _():
        update(masked=False)

    @pl.when(jnp.logical_and(block_needed, jnp.logical_not(block_full)))
    def _():
        update(masked=True)

    @pl.when(kv == pl.num_programs(3) - 1)
    def _():
        # Exact divide for the softmax denominator (reference-parity).
        o_ref[...] = (acc_sc[...] / l_sc[...]).astype(o_ref.dtype)


def pallas_flash_attention(q, k_cache, v_cache, *, start_pos, seqlen, n_rep):
    """q: (B, Hkv, seqlen*n_rep, Dh), already scaled by 1/sqrt(Dh), rows ordered
    (position, rep).  k/v caches: (Bmax, Hkv, Tmax, Dh)."""
    B, Hkv, QR, Dh = q.shape
    Bmax, Hkv2, Tmax, Dh2 = k_cache.shape
    assert Hkv == Hkv2 and Dh == Dh2 and QR == seqlen * n_rep
    total = start_pos + seqlen

    tq = _tile(seqlen, max(1, 256 // n_rep), 8)      # positions per q tile
    nq = seqlen // tq
    block_q = tq * n_rep                             # MXU M per step

    tkv = _tile(Tmax, _KV_TILE, 128)
    num_kv = pl.cdiv(total, tkv)

    def kv_index_map(b, h, qi, kv):
        # Clamp to the last block this q tile can see: fully-masked blocks repeat
        # the previous block index so their DMA is elided (compute is skipped
        # in-kernel via pl.when).
        last = (start_pos + (qi + 1) * tq - 1) // tkv
        return (b, h, jnp.minimum(kv, last), 0)

    q_spec = pl.BlockSpec((None, None, block_q, Dh),
                          lambda b, h, qi, kv: (b, h, qi, 0))
    o_spec = pl.BlockSpec((None, None, block_q, Dh),
                          lambda b, h, qi, kv: (b, h, qi, 0))
    kv_spec = pl.BlockSpec((None, None, tkv, Dh), kv_index_map)
    # TODO(synk): pipeline_mode=pl.Buffered(3) on kv_spec to hide KV DMA in decode.

    Hq = Hkv * n_rep
    cost = pl.CostEstimate(
        flops=int(4 * B * Hq * seqlen * total * Dh),
        transcendentals=int(B * Hq * seqlen * total),
        bytes_accessed=int(2 * B * Hq * seqlen * Dh * q.dtype.itemsize
                           + 2 * B * Hkv * total * Dh * k_cache.dtype.itemsize),
    )

    # TODO(synk): pass start_pos / valid KV length via scalar prefetch so one
    # compiled kernel serves every decode position in a serving loop.
    return pl.pallas_call(
        partial(_flash_kernel, tq=tq, tkv=tkv, n_rep=n_rep, start_pos=start_pos),
        out_shape=jax.ShapeDtypeStruct((B, Hkv, QR, Dh), q.dtype),
        grid=(B, Hkv, nq, num_kv),
        in_specs=[q_spec, kv_spec, kv_spec],
        out_specs=o_spec,
        scratch_shapes=[
            pltpu.VMEM((block_q, 1), jnp.float32),    # running max
            pltpu.VMEM((block_q, 1), jnp.float32),    # running denom
            pltpu.VMEM((block_q, Dh), jnp.float32),   # running accumulator
        ],
        compiler_params=_cparams(("parallel", "parallel", "parallel", "arbitrary")),
        cost_estimate=cost,
    )(q, k_cache, v_cache)


# ----------------------------------------------------------------------------
# Model glue (plain JAX): embeddings, RoPE, residuals
# ----------------------------------------------------------------------------

def precompute_freqs_cis(dim, end, theta=10000.0):
    freqs = 1.0 / theta ** (jnp.arange(0, dim, 2)[: dim // 2].astype(jnp.float32) / dim)
    t = jnp.arange(end, dtype=jnp.float32)
    f = jnp.outer(t, freqs)                          # (end, dim//2)
    return jnp.cos(f), jnp.sin(f)


def apply_rotary_emb(xq, xk, cos, sin, q_scale=1.0):
    """xq: (B, S, Hq, D), xk: (B, S, Hk, D); cos/sin: (S, D//2).
    The softmax scale is folded into q here (one small multiply) instead of
    scaling the score matrix every KV step inside the attention kernel."""
    def rot(x, s):
        xf = x.astype(jnp.float32)
        xr = xf.reshape(*xf.shape[:-1], -1, 2)
        a, b = xr[..., 0], xr[..., 1]
        c = cos[None, :, None, :]
        sn = sin[None, :, None, :]
        ra = (a * c - b * sn) * s
        rb = (a * sn + b * c) * s
        return jnp.stack([ra, rb], axis=-1).reshape(x.shape).astype(x.dtype)
    return rot(xq, q_scale), rot(xk, 1.0)


def attention_forward(h, lp, cos, sin, start_pos, cache_k, cache_v, cfg):
    bsz, seqlen, dim = h.shape
    n_heads = cfg["n_heads"]
    n_kv_heads = cfg["n_kv_heads"] or n_heads
    head_dim = dim // n_heads
    n_rep = n_heads // n_kv_heads
    eps = cfg["norm_eps"]

    # Fused attention_norm + concatenated QKV projection.
    x2 = h.reshape(bsz * seqlen, dim)
    qkv = pallas_rmsnorm_matmul(x2, lp["attention_norm"], lp["wqkv"], eps)
    q_dim = n_heads * head_dim
    kv_dim = n_kv_heads * head_dim
    xq = qkv[:, :q_dim].reshape(bsz, seqlen, n_heads, head_dim)
    xk = qkv[:, q_dim:q_dim + kv_dim].reshape(bsz, seqlen, n_kv_heads, head_dim)
    xv = qkv[:, q_dim + kv_dim:].reshape(bsz, seqlen, n_kv_heads, head_dim)

    scale = 1.0 / math.sqrt(head_dim)
    xq, xk = apply_rotary_emb(xq, xk, cos, sin, q_scale=scale)

    # In-place KV cache update (only the new tokens move; no full-cache copy).
    xk_t = xk.transpose(0, 2, 1, 3).astype(cache_k.dtype)   # (B, Hkv, S, Dh)
    xv_t = xv.transpose(0, 2, 1, 3).astype(cache_v.dtype)
    cache_k = pallas_kv_cache_update(xk_t, cache_k, start_pos)
    cache_v = pallas_kv_cache_update(xv_t, cache_v, start_pos)

    # Fold the n_rep query heads of every KV head into the q-row (MXU M) dim.
    # Rows ordered (position, rep) so in-kernel position = row // n_rep.
    q_g = (xq.reshape(bsz, seqlen, n_kv_heads, n_rep, head_dim)
              .transpose(0, 2, 1, 3, 4)
              .reshape(bsz, n_kv_heads, seqlen * n_rep, head_dim))

    attn = pallas_flash_attention(q_g, cache_k, cache_v,
                                  start_pos=start_pos, seqlen=seqlen, n_rep=n_rep)
    attn = (attn.reshape(bsz, n_kv_heads, seqlen, n_rep, head_dim)
                .transpose(0, 2, 1, 3, 4)
                .reshape(bsz * seqlen, n_heads * head_dim))

    out = pallas_matmul(attn, lp["wo"]).reshape(bsz, seqlen, dim)
    return out, cache_k, cache_v


def feed_forward(h, lp, eps):
    B, S, D = h.shape
    x2 = h.reshape(B * S, D)
    g = pallas_rms_swiglu(x2, lp["ffn_norm"], lp["w1"], lp["w3"], eps)
    return pallas_matmul(g, lp["w2"]).reshape(B, S, D)


def transformer_forward(params, caches, cfg, tokens, start_pos):
    bsz, seqlen = tokens.shape
    eps = cfg["norm_eps"]

    h = params["tok_embeddings"][tokens]              # (B, S, dim) bf16 gather
    cos = params["freqs_cos"][start_pos:start_pos + seqlen]
    sin = params["freqs_sin"][start_pos:start_pos + seqlen]
    # Causal mask is generated inside the attention kernel; no (S, T) HBM mask.

    new_caches = []
    for li, lp in enumerate(params["layers"]):
        ck, cv = caches[li]
        attn_out, ck, cv = attention_forward(h, lp, cos, sin, start_pos, ck, cv, cfg)
        h = h + attn_out
        h = h + feed_forward(h, lp, eps)
        new_caches.append((ck, cv))

    logits = pallas_rmsnorm_matmul(
        h.reshape(bsz * seqlen, -1), params["norm"], params["output"], eps,
        out_dtype=jnp.float32)
    return logits.reshape(bsz, seqlen, -1), new_caches


# ----------------------------------------------------------------------------
# Pure-JAX reference (mirrors the PyTorch module with matching precisions)
# ----------------------------------------------------------------------------

def _rmsnorm_ref(x, g, eps):
    xf = x.astype(jnp.float32)
    ms = jnp.mean(xf * xf, axis=-1, keepdims=True)
    return (xf * lax.rsqrt(ms + eps)) * g


def reference_forward(params, caches, cfg, tokens, start_pos):
    bsz, seqlen = tokens.shape
    dim = cfg["dim"]
    n_heads = cfg["n_heads"]
    n_kv = cfg["n_kv_heads"] or n_heads
    head_dim = dim // n_heads
    n_rep = n_heads // n_kv
    eps = cfg["norm_eps"]
    bf16 = jnp.bfloat16
    total = start_pos + seqlen
    scale = 1.0 / math.sqrt(head_dim)

    h = params["tok_embeddings"][tokens]
    cos = params["freqs_cos"][start_pos:start_pos + seqlen]
    sin = params["freqs_sin"][start_pos:start_pos + seqlen]

    new_caches = []
    for li, lp in enumerate(params["layers"]):
        ck, cv = caches[li]
        x2 = h.reshape(bsz * seqlen, dim)
        xn = _rmsnorm_ref(x2, lp["attention_norm"], eps).astype(bf16)
        qkv = jnp.dot(xn, lp["wqkv"], preferred_element_type=jnp.float32).astype(bf16)
        q_dim = n_heads * head_dim
        kv_dim = n_kv * head_dim
        xq = qkv[:, :q_dim].reshape(bsz, seqlen, n_heads, head_dim)
        xk = qkv[:, q_dim:q_dim + kv_dim].reshape(bsz, seqlen, n_kv, head_dim)
        xv = qkv[:, q_dim + kv_dim:].reshape(bsz, seqlen, n_kv, head_dim)
        xq, xk = apply_rotary_emb(xq, xk, cos, sin, q_scale=scale)
        ck = lax.dynamic_update_slice(ck, xk.transpose(0, 2, 1, 3).astype(ck.dtype),
                                      (0, 0, start_pos, 0))
        cv = lax.dynamic_update_slice(cv, xv.transpose(0, 2, 1, 3).astype(cv.dtype),
                                      (0, 0, start_pos, 0))
        keys = jnp.repeat(ck[:bsz, :, :total], n_rep, axis=1)
        vals = jnp.repeat(cv[:bsz, :, :total], n_rep, axis=1)
        q = xq.transpose(0, 2, 1, 3)                  # (B, Hq, S, Dh)
        scores = jnp.einsum('bhsd,bhtd->bhst', q, keys,
                            preferred_element_type=jnp.float32)
        q_pos = start_pos + jnp.arange(seqlen)[:, None]
        k_pos = jnp.arange(total)[None, :]
        scores = jnp.where(k_pos <= q_pos, scores, jnp.float32(-1e30))
        probs = jax.nn.softmax(scores, axis=-1)
        attn = jnp.einsum('bhst,bhtd->bhsd', probs.astype(bf16), vals,
                          preferred_element_type=jnp.float32).astype(bf16)
        attn = attn.transpose(0, 2, 1, 3).reshape(bsz * seqlen, n_heads * head_dim)
        attn_out = jnp.dot(attn, lp["wo"],
                           preferred_element_type=jnp.float32).astype(bf16)
        h = h + attn_out.reshape(bsz, seqlen, dim)

        x2 = h.reshape(bsz * seqlen, dim)
        xn = _rmsnorm_ref(x2, lp["ffn_norm"], eps).astype(bf16)
        h1 = jnp.dot(xn, lp["w1"], preferred_element_type=jnp.float32)
        h3 = jnp.dot(xn, lp["w3"], preferred_element_type=jnp.float32)
        g = (h1 * jax.nn.sigmoid(h1) * h3).astype(bf16)
        ffn = jnp.dot(g, lp["w2"], preferred_element_type=jnp.float32).astype(bf16)
        h = h + ffn.reshape(bsz, seqlen, dim)
        new_caches.append((ck, cv))

    xn = _rmsnorm_ref(h.reshape(bsz * seqlen, dim), params["norm"], eps).astype(bf16)
    logits = jnp.dot(xn, params["output"], preferred_element_type=jnp.float32)
    return logits.reshape(bsz, seqlen, -1), new_caches


# ----------------------------------------------------------------------------
# Deterministic parameter init (synthetic; mirrors module __init__ shapes)
# ----------------------------------------------------------------------------

def init_params(key, cfg):
    dim = cfg["dim"]
    n_heads = cfg["n_heads"]
    n_kv_heads = cfg["n_kv_heads"] or n_heads
    head_dim = dim // n_heads
    vocab = cfg["vocab_size"]

    hidden_dim = 4 * dim
    hidden_dim = int(2 * hidden_dim / 3)
    if cfg["ffn_dim_multiplier"] is not None:
        hidden_dim = int(cfg["ffn_dim_multiplier"] * hidden_dim)
    m = cfg["multiple_of"]
    hidden_dim = m * ((hidden_dim + m - 1) // m)

    wdtype = jnp.bfloat16
    # TODO(synk): fp8 weights with bf16 activations on v7x (~2x MXU, half weight DMA).

    def dense(k, fan_in, fan_out):
        return (jax.random.normal(k, (fan_in, fan_out), jnp.float32) * 0.02).astype(wdtype)

    keys = jax.random.split(key, 2 + 7 * cfg["n_layers"])
    ki = iter(keys)

    params = {
        "tok_embeddings": (jax.random.normal(next(ki), (vocab, dim), jnp.float32)
                           * 0.02).astype(wdtype),
        "output": dense(next(ki), dim, vocab),
        "norm": jnp.ones((dim,), jnp.float32),
        "layers": [],
    }
    cos, sin = precompute_freqs_cis(head_dim, cfg["max_seq_len"] * 2)
    params["freqs_cos"] = cos
    params["freqs_sin"] = sin

    for _ in range(cfg["n_layers"]):
        wq = dense(next(ki), dim, n_heads * head_dim)
        wk = dense(next(ki), dim, n_kv_heads * head_dim)
        wv = dense(next(ki), dim, n_kv_heads * head_dim)
        params["layers"].append({
            "wqkv": jnp.concatenate([wq, wk, wv], axis=1),
            "wo": dense(next(ki), n_heads * head_dim, dim),
            "w1": dense(next(ki), dim, hidden_dim),
            "w2": dense(next(ki), hidden_dim, dim),
            "w3": dense(next(ki), dim, hidden_dim),
            "attention_norm": jnp.ones((dim,), jnp.float32),
            "ffn_norm": jnp.ones((dim,), jnp.float32),
        })
    return params


def init_caches(cfg):
    n_kv = cfg["n_kv_heads"] or cfg["n_heads"]
    head_dim = cfg["dim"] // cfg["n_heads"]
    shape = (cfg["max_batch_size"], n_kv, cfg["max_seq_len"], head_dim)
    return [(jnp.zeros(shape, jnp.bfloat16), jnp.zeros(shape, jnp.bfloat16))
            for _ in range(cfg["n_layers"])]


# ----------------------------------------------------------------------------

if __name__ == "__main__":
    cfg = dict(
        dim=256,
        n_layers=2,
        n_heads=4,
        n_kv_heads=2,          # exercises GQA folding (n_rep=2)
        vocab_size=512,
        multiple_of=128,
        ffn_dim_multiplier=None,
        norm_eps=1e-5,
        max_batch_size=2,
        max_seq_len=128,
    )

    key = jax.random.PRNGKey(0)
    pkey, tkey, dkey = jax.random.split(key, 3)
    params = init_params(pkey, cfg)

    batch, seqlen = 2, 16
    tokens = jax.random.randint(tkey, (batch, seqlen), 0, cfg["vocab_size"],
                                dtype=jnp.int32)

    # ---- prefill (start_pos = 0) ----
    caches = init_caches(cfg)
    logits, caches = transformer_forward(params, caches, cfg, tokens, start_pos=0)
    jax.block_until_ready(logits)
    assert logits.shape == (batch, seqlen, cfg["vocab_size"])
    assert logits.dtype == jnp.float32
    assert bool(jnp.all(jnp.isfinite(logits)))

    ref_caches = init_caches(cfg)
    ref_logits, ref_caches = reference_forward(params, ref_caches, cfg, tokens,
                                               start_pos=0)
    err = float(jnp.max(jnp.abs(logits - ref_logits)))
    assert err < 3e-2, f"prefill mismatch vs reference: {err}"

    # ---- one decode step (start_pos > 0, S = 1, reuses the updated KV cache) ----
    next_tok = jax.random.randint(dkey, (batch, 1), 0, cfg["vocab_size"],
                                  dtype=jnp.int32)
    logits_d, caches = transformer_forward(params, caches, cfg, next_tok,
                                           start_pos=seqlen)
    jax.block_until_ready(logits_d)
    assert bool(jnp.all(jnp.isfinite(logits_d)))

    ref_logits_d, ref_caches = reference_forward(params, ref_caches, cfg, next_tok,
                                                 start_pos=seqlen)
    err_d = float(jnp.max(jnp.abs(logits_d - ref_logits_d)))
    assert err_d < 3e-2, f"decode mismatch vs reference: {err_d}"

    print("KERNEL_OK")
</pallas_src>

<mosaic_0001>
module attributes {stable_mosaic.version = 11 : i64} {
  func.func @_rms_matmul_kernel(%arg0: i32, %arg1: i32, %arg2: memref<32x256xbf16, #tpu.memory_space<vmem>>, %arg3: memref<1x256xf32, #tpu.memory_space<vmem>>, %arg4: memref<256x256xbf16, #tpu.memory_space<vmem>>, %arg5: memref<32x256xbf16, #tpu.memory_space<vmem>>, %arg6: memref<32x256xbf16, #tpu.memory_space<vmem>>) attributes {dimension_semantics = [#tpu.dimension_semantics<parallel>, #tpu.dimension_semantics<arbitrary>], iteration_bounds = array<i64: 1, 2>, scalar_prefetch = 0 : i64, scratch_operands = 1 : i64, tpu.core_type = #tpu.core_type<tc>, window_params = [{transform_indices = @transform_0, window_bounds = array<i64: 32, 256>}, {pipeline_mode = #tpu.pipeline_mode<synchronous>, transform_indices = @transform_1, window_bounds = array<i64: 1, 256>}, {transform_indices = @transform_2, window_bounds = array<i64: 256, 256>}, {transform_indices = @transform_3, window_bounds = array<i64: 32, 256>}]} {
    %c0_i32 = arith.constant 0 : i32
    %0 = arith.cmpi eq, %arg1, %c0_i32 : i32
    %1 = arith.extui %0 : i1 to i32
    %c0_i32_0 = arith.constant 0 : i32
    %2 = arith.cmpi ne, %1, %c0_i32_0 : i32
    scf.if %2 {
      %c0_6 = arith.constant 0 : index
      %c0_7 = arith.constant 0 : index
      %8 = vector.load %arg2[%c0_6, %c0_7] : memref<32x256xbf16, #tpu.memory_space<vmem>>, vector<32x256xbf16>
      %9 = arith.extf %8 : vector<32x256xbf16> to vector<32x256xf32>
      %10 = arith.mulf %9, %9 : vector<32x256xf32>
      %cst_8 = arith.constant dense<0.000000e+00> : vector<32xf32>
      %11 = vector.multi_reduction <add>, %10, %cst_8 [1] : vector<32x256xf32> to vector<32xf32>
      %12 = vector.shape_cast %11 : vector<32xf32> to vector<32x1xf32>
      %cst_9 = arith.constant 2.560000e+02 : f32
      %13 = vector.broadcast %cst_9 : f32 to vector<32x1xf32>
      %14 = arith.divf %12, %13 : vector<32x1xf32>
      %cst_10 = arith.constant 9.99999974E-6 : f32
      %15 = vector.broadcast %cst_10 : f32 to vector<32x1xf32>
      %16 = arith.addf %14, %15 : vector<32x1xf32>
      %17 = math.rsqrt %16 : vector<32x1xf32>
      %18 = vector.broadcast %17 : vector<32x1xf32> to vector<32x256xf32>
      %19 = arith.mulf %9, %18 : vector<32x256xf32>
      %c0_11 = arith.constant 0 : index
      %c0_12 = arith.constant 0 : index
      %20 = vector.load %arg3[%c0_11, %c0_12] : memref<1x256xf32, #tpu.memory_space<vmem>>, vector<1x256xf32>
      %21 = vector.broadcast %20 : vector<1x256xf32> to vector<32x256xf32>
      %22 = arith.mulf %19, %21 : vector<32x256xf32>
      %23 = arith.truncf %22 : vector<32x256xf32> to vector<32x256xbf16>
      %c0_13 = arith.constant 0 : index
      %c0_14 = arith.constant 0 : index
      %24 = vector.load %arg6[%c0_13, %c0_14] : memref<32x256xbf16, #tpu.memory_space<vmem>>, vector<32x256xbf16>
      tpu.vector_store %arg6[%c0_13, %c0_14], %23 {strides = array<i32>} : memref<32x256xbf16, #tpu.memory_space<vmem>>, vector<32x256xbf16>,
    } else {
    }
    %c0 = arith.constant 0 : index
    %c0_1 = arith.constant 0 : index
    %3 = vector.load %arg6[%c0, %c0_1] : memref<32x256xbf16, #tpu.memory_space<vmem>>, vector<32x256xbf16>
    %c0_2 = arith.constant 0 : index
    %c0_3 = arith.constant 0 : index
    %4 = vector.load %arg4[%c0_2, %c0_3] : memref<256x256xbf16, #tpu.memory_space<vmem>>, vector<256x256xbf16>
    %cst = arith.constant dense<0.000000e+00> : vector<32x256xf32>
    %5 = tpu.matmul %3, %4, %cst {dimension_numbers = #tpu.dot_dimension_numbers<[1], [0], [0], [1], [0, 0, 1, 1], [], []>} : vector<32x256xbf16>, vector<256x256xbf16>, vector<32x256xf32> -> vector<32x256xf32>
    %6 = arith.truncf %5 : vector<32x256xf32> to vector<32x256xbf16>
    %c0_4 = arith.constant 0 : index
    %c0_5 = arith.constant 0 : index
    %7 = vector.load %arg5[%c0_4, %c0_5] : memref<32x256xbf16, #tpu.memory_space<vmem>>, vector<32x256xbf16>
    tpu.vector_store %arg5[%c0_4, %c0_5], %6 {strides = array<i32>} : memref<32x256xbf16, #tpu.memory_space<vmem>>, vector<32x256xbf16>,
    return
  }
  func.func @transform_0(%arg0: i32, %arg1: i32) -> (i32, i32) {
    %c0_i32 = arith.constant 0 : i32
    %c0_i32_0 = arith.constant 0 : i32
    return %arg0, %c0_i32 : i32, i32
  }
  func.func @transform_1(%arg0: i32, %arg1: i32) -> (i32, i32) {
    %c0_i32 = arith.constant 0 : i32
    %c0_i32_0 = arith.constant 0 : i32
    %c0_i32_1 = arith.constant 0 : i32
    return %c0_i32, %c0_i32_0 : i32, i32
  }
  func.func @transform_2(%arg0: i32, %arg1: i32) -> (i32, i32) {
    %c0_i32 = arith.constant 0 : i32
    %c0_i32_0 = arith.constant 0 : i32
    return %c0_i32, %arg1 : i32, i32
  }
  func.func @transform_3(%arg0: i32, %arg1: i32) -> (i32, i32) {
    %c0_i32 = arith.constant 0 : i32
    return %arg0, %arg1 : i32, i32
  }
}

</mosaic_0001>

<llo_original>
// kernel: tpu_custom_call.1
$region0: #{tpu_custom_call.1}
  #allocation0 [shape = 'u32[]', space=smem, size = 0x4, offset = 0x4, fixed_abs, tag = 'smem constant byte address 0x4 - core index']
  #allocation1 [shape = 'u32[144,128]{1,0:T(1,128)}', space=vmem, size = 0x12000, scoped, tag = 'internal scratch']
  #allocation2 [shape = 'bf16[32,256]{1,0:T(8,128)(2,1)}', space=vmem, size = 0x4000, scoped, tag = 'scratch operand']
  %s0 = inlined_call_operand.hbm [shape: bf16[32,256], index: 0, kind: input, shape index: {}]
  %s1 = inlined_call_operand.hbm [shape: f32[1,256], index: 1, kind: input, shape index: {}]
  %s2 = inlined_call_operand.hbm [shape: bf16[256,512], index: 2, kind: input, shape index: {}]
  %s3 = inlined_call_operand.hbm [shape: bf16[32,512], index: 3, kind: output, shape index: {}]
  %s4 = sld [smem:[#allocation0]]
  $region61: #{tpu_custom_call.1} parent=0
    _
  %s6 = ssub.s32 1, %s4
  %s7 = scalar_select 0, %s6, %s4
  $region1: #{tpu_custom_call.1} parent=0
    #allocation3 [shape = 'u8[16384]{0}', space=vmem, size = 0x4000, scoped, tag = 'input window, operand 0, single buffered']
    #allocation4 [shape = 's32[2]{0}', space=sflag, size = 0x8, scoped, tag = 'scoped memory for tpu_custom_call.1']
    #allocation5 [shape = 's32[2]{0}', space=sflag, size = 0x8, scoped, tag = 'scoped memory for tpu_custom_call.1']
    #allocation6 [shape = 'u8[1024]{0}', space=vmem, size = 0x400, scoped, tag = 'input window, operand 1, single buffered']
    #allocation7 [shape = 's32[1]{0}', space=sflag, size = 0x4, scoped, tag = 'scoped memory for tpu_custom_call.1']
    #allocation8 [shape = 'u8[262144]{0}', space=vmem, size = 0x40000, scoped, tag = 'input window, operand 2']
    #allocation9 [shape = 'u8[32768]{0}', space=vmem, size = 0x8000, scoped, tag = 'output window, operand 0']
    %8 = vsyncpa [#allocation4], 0
    %9 = vsyncpa [#allocation7], 0
    %10 = vsyncpa [#allocation5], 0
    %s11 = scalar_lea.sflag [#allocation5], 1
    %12 = vsyncpa %s11, 0
    loop: start=0, step=1, limit=4
    $region2: #{tpu_custom_call.1} parent=1 // loop_pre_header
      _
    $region3: #{tpu_custom_call.1} parent=1 // loop_header
      %s14 = sphi 0, %s18
      %p15 = scmp.ge.s32.totalorder %s14, 4
      %s21 = sphi 0, %s33
      %s22 = sphi 0, %s29
      %s23 = sphi 0, %s21
      %s24 = sphi 0, %s22
      %s25 = sphi 0, %s23
      %s26 = sphi 0, %s24
      %s36 = sphi 0, %s38
      %s39 = sphi 0, %s36
      %s40 = sphi 0, %s39
      %s56 = sphi 0, %s40
      %s60 = sphi 0, %s60
      %s62 = sphi 0, %s60
      %s63 = sphi 0, %s62
      %s77 = sphi 0, %s63
      %s83 = sphi 0, %s85
      %s86 = sphi 0, %s83
      %s87 = sphi 0, %s86
      %s103 = sphi 0, %s87
      %s111 = sphi 0, %s113
      %s114 = sphi 0, %s111
      %s115 = sphi 0, %s114
      %s131 = sphi 0, %s115
    $region4: #{tpu_custom_call.1} parent=1 // loop_header_branch
      %17 = sbr.rel (%p15) target = $region8
    $region5: #{tpu_custom_call.1} parent=1 // loop_body
      %s19 = ssub.s32 %s14, 1
      %s20 = ssub.s32 %s14, 2
      %s27 = sadd.s32 1, %s22
      %p28 = scmp.ge.s32.totalorder %s27, 2
      %s29 = scalar_select %p28, 0, %s27
      %s30 = sadd.s32 1, %s21
      %s31 = scalar_select %p28, %s30, %s21
      %p32 = scmp.ge.s32.totalorder %s31, 1
      %s33 = scalar_select %p32, 0, %s31
      %s34 = ssub.s32 %s21, %s33
      %p35 = scmp.eq.s32.totalorder %s34, 0
      %s37 = sadd.s32 %s36, 1
      %s38 = scalar_select %p35, %s36, %s37
      %p41 = pneg %p35
      %p42 = scmp.eq.s32.totalorder %s14, 1
      %p43 = por %p41, %p42
      %p44 = scmp.ne.s32.totalorder %s36, %s39
      %p45 = scmp.eq.s32.totalorder %s14, 0
      %p46 = por %p44, %p45
      %p47 = scmp.ne.s32.totalorder %s36, %s39
      %p48 = scmp.eq.s32.totalorder %s19, 1
      %p49 = por %p47, %p48
      %p50 = scmp.ne.s32.totalorder %s39, %s40
      %p51 = scmp.eq.s32.totalorder %s19, 0
      %p52 = por %p50, %p51
      %p53 = scmp.ne.s32.totalorder %s39, %s40
      %p54 = scmp.eq.s32.totalorder %s20, 1
      %p55 = por %p53, %p54
      %p57 = scmp.ne.s32.totalorder %s40, %s56
      %p58 = scmp.eq.s32.totalorder %s20, 0
      %p59 = por %p57, %p58
      %s61 = sadd.s32 %s60, 1
      %p64 = scmp.eq.s32.totalorder %s14, 1
      %p65 = scmp.ne.s32.totalorder %s60, %s62
      %p66 = scmp.eq.s32.totalorder %s14, 0
      %p67 = por %p65, %p66
      %p68 = scmp.ne.s32.totalorder %s60, %s62
      %p69 = scmp.eq.s32.totalorder %s19, 1
      %p70 = por %p68, %p69
      %p71 = scmp.ne.s32.totalorder %s62, %s63
      %p72 = scmp.eq.s32.totalorder %s19, 0
      %p73 = por %p71, %p72
      %p74 = scmp.ne.s32.totalorder %s62, %s63
      %p75 = scmp.eq.s32.totalorder %s20, 1
      %p76 = por %p74, %p75
      %p78 = scmp.ne.s32.totalorder %s63, %s77
      %p79 = scmp.eq.s32.totalorder %s20, 0
      %p80 = por %p78, %p79
      %s81 = ssub.s32 %s22, %s29
      %p82 = scmp.eq.s32.totalorder %s81, 0
      %s84 = sadd.s32 %s83, 1
      %s85 = scalar_select %p82, %s83, %s84
      %p88 = pneg %p82
      %p89 = scmp.eq.s32.totalorder %s14, 1
      %p90 = por %p88, %p89
      %p91 = scmp.ne.s32.totalorder %s83, %s86
      %p92 = scmp.eq.s32.totalorder %s14, 0
      %p93 = por %p91, %p92
      %p94 = scmp.ne.s32.totalorder %s83, %s86
      %p95 = scmp.eq.s32.totalorder %s19, 1
      %p96 = por %p94, %p95
      %p97 = scmp.ne.s32.totalorder %s86, %s87
      %p98 = scmp.eq.s32.totalorder %s19, 0
      %p99 = por %p97, %p98
      %p100 = scmp.ne.s32.totalorder %s86, %s87
      %p101 = scmp.eq.s32.totalorder %s20, 1
      %p102 = por %p100, %p101
      %p104 = scmp.ne.s32.totalorder %s87, %s103
      %p105 = scmp.eq.s32.totalorder %s20, 0
      %p106 = por %p104, %p105
      %s107 = ssub.s32 %s21, %s33
      %s108 = ssub.s32 %s22, %s29
      %s109 = sor.u32 %s107, %s108
      %p110 = scmp.eq.s32.totalorder %s109, 0
      %s112 = sadd.s32 %s111, 1
      %s113 = scalar_select %p110, %s111, %s112
      %p116 = pneg %p110
      %p117 = scmp.eq.s32.totalorder %s14, 1
      %p118 = por %p116, %p117
      %p119 = scmp.ne.s32.totalorder %s111, %s114
      %p120 = scmp.eq.s32.totalorder %s14, 0
      %p121 = por %p119, %p120
      %p122 = scmp.ne.s32.totalorder %s111, %s114
      %p123 = scmp.eq.s32.totalorder %s19, 1
      %p124 = por %p122, %p123
      %p125 = scmp.ne.s32.totalorder %s114, %s115
      %p126 = scmp.eq.s32.totalorder %s19, 0
      %p127 = por %p125, %p126
      %p128 = scmp.ne.s32.totalorder %s114, %s115
      %p129 = scmp.eq.s32.totalorder %s20, 1
      %p130 = por %p128, %p129
      %p132 = scmp.ne.s32.totalorder %s115, %s131
      %p133 = scmp.eq.s32.totalorder %s20, 0
      %p134 = por %p132, %p133
      %p135 = scmp.le.s32.totalorder 1, %s14
      %p136 = scmp.lt.s32.totalorder %s14, 3
      %p137 = pnand %p135, %p136
      %p138 = pneg %p137
      // Predicated region
      $region9: #{tpu_custom_call.1} parent=5 // pred_check
        _
      $region10: #{tpu_custom_call.1} parent=5 // pred_check_branch
        %140 = sbr.rel (%p137) target = $region12
      $region11: #{tpu_custom_call.1} parent=5 // pred_region
        %s141 = ssub.s32 %s14, 1
        // Predicated region
        $region13: #{tpu_custom_call.1} parent=11 // pred_check
          %p142 = pneg %p52
        $region14: #{tpu_custom_call.1} parent=11 // pred_check_branch
          %144 = sbr.rel (%p142) target = $region16
        $region15: #{tpu_custom_call.1} parent=11 // pred_region
          %s145 = smul.u32 4, %s23
          %s147 = ssub.s32 512, 512
          %148 = vsyncadd [#allocation4], %s147
          %s149 = smul.addr %s145, 2
          %s150 = smul.addr %s149, 64
          %s151 = scalar_lea.hbm %s0, %s150
          %s152 = sshll.u32 [#allocation3], 4
          %s153 = int_to_ptr.vmem [resolvable:$true] %s152
          %158 = dma.hbm_to_vmem [thread:$0]  %s151, 512, %s153, [#allocation4], 128, 128, 8
        $region16: #{tpu_custom_call.1} parent=11 // pred_fallthru
          _
        // Predicated region
        $region17: #{tpu_custom_call.1} parent=11 // pred_check
          %p159 = pneg %p73
        $region18: #{tpu_custom_call.1} parent=11 // pred_check_branch
          %161 = sbr.rel (%p159) target = $region20
        $region19: #{tpu_custom_call.1} parent=11 // pred_region
          %s163 = ssub.s32 32, 32
          %164 = vsyncadd [#allocation7], %s163
          %s166 = sshll.u32 [#allocation6], 4
          %s167 = int_to_ptr.vmem [resolvable:$true] %s166
          %169 = dma.hbm_to_vmem [thread:$0]  %s1, 32, %s167, [#allocation7]
        $region20: #{tpu_custom_call.1} parent=11 // pred_fallthru
          _
      $region12: #{tpu_custom_call.1} parent=5 // pred_fallthru
        _
      %p170 = scmp.lt.s32.totalorder %s14, 2
      // Predicated region
      $region21: #{tpu_custom_call.1} parent=5 // pred_check
        %p171 = pneg %p170
      $region22: #{tpu_custom_call.1} parent=5 // pred_check_branch
        %173 = sbr.rel (%p171) target = $region24
      $region23: #{tpu_custom_call.1} parent=5 // pred_region
        // Predicated region
        $region25: #{tpu_custom_call.1} parent=23 // pred_check
          %p174 = pneg %p93
        $region26: #{tpu_custom_call.1} parent=23 // pred_check_branch
          %176 = sbr.rel (%p174) target = $region28
        $region27: #{tpu_custom_call.1} parent=23 // pred_region
          %s177 = sand.u32 %s14, 1
          %s178 = scalar_lea.sflag [#allocation4], %s177
          %s179 = sand.u32 %s83, 1
          %s180 = smul.addr %s179, 256
          %s181 = scalar_lea.vmem [#allocation8], %s180
          %s182 = smul.u32 2, %s22
          %s184 = ssub.s32 4096, 4096
          %185 = vsyncadd %s178, %s184
          %s186 = smul.addr %s182, 64
          %s187 = scalar_lea.hbm %s2, %s186
          %s188 = sshll.u32 %s181, 4
          %s189 = int_to_ptr.vmem [resolvable:$true] %s188
          %194 = dma.hbm_to_vmem [thread:$0]  %s187, 4096, %s189, %s178, 256, 128, 8
        $region28: #{tpu_custom_call.1} parent=23 // pred_fallthru
          _
      $region24: #{tpu_custom_call.1} parent=5 // pred_fallthru
        _
      %p195 = scmp.le.s32.totalorder 1, %s14
      %p196 = scmp.lt.s32.totalorder %s14, 3
      %p197 = pnand %p195, %p196
      %p198 = pneg %p197
      // Predicated region
      $region29: #{tpu_custom_call.1} parent=5 // pred_check
        _
      $region30: #{tpu_custom_call.1} parent=5 // pred_check_branch
        %200 = sbr.rel (%p197) target = $region32
      $region31: #{tpu_custom_call.1} parent=5 // pred_region
        %s201 = ssub.s32 %s14, 1
        // Predicated region
        $region33: #{tpu_custom_call.1} parent=31 // pred_check
          %p202 = pneg %p52
        $region34: #{tpu_custom_call.1} parent=31 // pred_check_branch
          %204 = sbr.rel (%p202) target = $region36
        $region35: #{tpu_custom_call.1} parent=31 // pred_region
          %205 = dma.done [#allocation4], 512
        $region36: #{tpu_custom_call.1} parent=31 // pred_fallthru
          _
        // Predicated region
        $region37: #{tpu_custom_call.1} parent=31 // pred_check
          %p206 = pneg %p73
        $region38: #{tpu_custom_call.1} parent=31 // pred_check_branch
          %208 = sbr.rel (%p206) target = $region40
        $region39: #{tpu_custom_call.1} parent=31 // pred_region
          %209 = dma.done [#allocation7], 32
        $region40: #{tpu_custom_call.1} parent=31 // pred_fallthru
          _
        %s210 = sand.u32 %s19, 1
        %s211 = scalar_lea.sflag [#allocation4], %s210
        %s212 = sand.u32 %s86, 1
        %s213 = smul.addr %s212, 256
        %s214 = scalar_lea.vmem [#allocation8], %s213
        // Predicated region
        $region41: #{tpu_custom_call.1} parent=31 // pred_check
          %p215 = pneg %p99
        $region42: #{tpu_custom_call.1} parent=31 // pred_check_branch
          %217 = sbr.rel (%p215) target = $region44
        $region43: #{tpu_custom_call.1} parent=31 // pred_region
          %218 = dma.done %s211, 4096
        $region44: #{tpu_custom_call.1} parent=31 // pred_fallthru
          _
        %p219 = pneg %p52
        %p220 = pneg %p49
        %p221 = pneg %p73
        %p222 = pneg %p70
        %s223 = sand.u32 %s19, 1
        %s224 = scalar_lea.sflag [#allocation4], %s223
        %s225 = sand.u32 %s86, 1
        %s226 = smul.addr %s225, 256
        %s227 = scalar_lea.vmem [#allocation8], %s226
        %p228 = pneg %p99
        %p229 = pneg %p96
        %p230 = pneg %p127
        %p231 = pneg %p124
        %s232 = sand.u32 %s114, 1
        %s233 = scalar_lea.sflag [#allocation5], %s232
        %s234 = sand.u32 %s114, 1
        %s235 = smul.addr %s234, 32
        %s236 = scalar_lea.vmem [#allocation9], %s235
        %s237 = smul.u32 4, %s23
        %s238 = smul.u32 2, %s24
        %s239 = smul.u32 4, %s23
        %s240 = smul.u32 2, %s24
        %p241 = scmp.eq.s32.totalorder %s24, 0
        // Predicated region
        $region45: #{tpu_custom_call.1} parent=31 // pred_check
          %p242 = pneg %p241
        $region46: #{tpu_custom_call.1} parent=31 // pred_check_branch
          %244 = sbr.rel (%p242) target = $region48
        $region47: #{tpu_custom_call.1} parent=31 // pred_region
          %v245 = vld [vmem:[#allocation3] sm:$0xff]
          %v246 = vld [vmem:[#allocation3 + $0x8] sm:$0xff]
          %v247 = vld [vmem:[#allocation3 + $0x10] sm:$0xff]
          %v248 = vld [vmem:[#allocation3 + $0x18] sm:$0xff]
          %v249 = vunpack.c.l.bf16 %v245
          %v250 = vunpack.c.h.bf16 %v245
          %v251 = vunpack.c.l.bf16 %v246
          %v252 = vunpack.c.h.bf16 %v246
          %v253 = vunpack.c.l.bf16 %v247
          %v254 = vunpack.c.h.bf16 %v247
          %v255 = vunpack.c.l.bf16 %v248
          %v256 = vunpack.c.h.bf16 %v248
          %v257 = vmul.f32 %v249, %v249
          %v258 = vmul.f32 %v250, %v250
          %v259 = vmul.f32 %v251, %v251
          %v260 = vmul.f32 %v252, %v252
          %v261 = vmul.f32 %v253, %v253
          %v262 = vmul.f32 %v254, %v254
          %v263 = vmul.f32 %v255, %v255
          %v264 = vmul.f32 %v256, %v256
          %v265 = vadd.f32 %v257, %v258
          %266 = vadd.xlane.f32.xlu0 %v265
          %v267 = vpop.xlane.xlu0 %266
          %v268 = vadd.f32 %v259, %v260
          %269 = vadd.xlane.f32.xlu0 %v268
          %v270 = vpop.xlane.xlu0 %269
          %v271 = vadd.f32 %v261, %v262
          %272 = vadd.xlane.f32.xlu0 %v271
          %v273 = vpop.xlane.xlu0 %272
          %v274 = vadd.f32 %v263, %v264
          %275 = vadd.xlane.f32.xlu0 %v274
          %v276 = vpop.xlane.xlu0 %275
          %v277 = vrcp.pop 256.0
          %v278 = vmul.f32 %v267, %v277
          %v279 = vmul.f32 %v270, %v277
          %v280 = vmul.f32 %v273, %v277
          %v281 = vmul.f32 %v276, %v277
          %v282 = vadd.f32 %v278, 1e-05
          %v283 = vadd.f32 %v279, 1e-05
          %v284 = vadd.f32 %v280, 1e-05
          %v285 = vadd.f32 %v281, 1e-05
          %v286 = vrsqrt.pop %v282
          %v287 = vrsqrt.pop %v283
          %v288 = vrsqrt.pop %v284
          %v289 = vrsqrt.pop %v285
          %v290 = vmul.f32 %v249, %v286
          %v291 = vmul.f32 %v250, %v286
          %v292 = vmul.f32 %v251, %v287
          %v293 = vmul.f32 %v252, %v287
          %v294 = vmul.f32 %v253, %v288
          %v295 = vmul.f32 %v254, %v288
          %v296 = vmul.f32 %v255, %v289
          %v297 = vmul.f32 %v256, %v289
          %v298 = vld [vmem:[#allocation6] sm:$0x3]
          %v300 = vlaneseq
          %v301 = vshrl.u32 %v300, 7
          %v302 = vsub.s32 0, %v301
          %v303 = vrot.slane %v298, %v302
          %v304 = vlaneseq
          %v305 = vshrl.u32 %v304, 7
          %v306 = vsub.s32 1, %v305
          %v307 = vrot.slane %v298, %v306
          %v310 = vmul.f32 %v290, %v303
          %v311 = vmul.f32 %v291, %v307
          %v312 = vmul.f32 %v292, %v303
          %v313 = vmul.f32 %v293, %v307
          %v314 = vmul.f32 %v294, %v303
          %v315 = vmul.f32 %v295, %v307
          %v316 = vmul.f32 %v296, %v303
          %v317 = vmul.f32 %v297, %v307
          %v318 = vpack.c.bf16 %v312, %v310
          %v319 = vpack.c.bf16 %v313, %v311
          %v320 = vpack.c.bf16 %v316, %v314
          %v321 = vpack.c.bf16 %v317, %v315
          %v326 = vunpack.c.l.b16 %v318
          %v327 = vunpack.c.l.b16 %v319
          %v328 = vunpack.c.h.b16 %v318
          %v329 = vunpack.c.h.b16 %v319
          %v330 = vunpack.c.l.b16 %v320
          %v331 = vunpack.c.l.b16 %v321
          %v332 = vunpack.c.h.b16 %v320
          %v333 = vunpack.c.h.b16 %v321
          %v334 = vpack.c.b16 %v327, %v326
          %v335 = vpack.c.b16 %v329, %v328
          %v336 = vpack.c.b16 %v331, %v330
          %v337 = vpack.c.b16 %v333, %v332
          %342 = vst [vmem:[#allocation2] sm:$0xff] %v334
          %343 = vst [vmem:[#allocation2 + $0x8] sm:$0xff] %v335
          %344 = vst [vmem:[#allocation2 + $0x10] sm:$0xff] %v336
          %345 = vst [vmem:[#allocation2 + $0x18] sm:$0xff] %v337
        $region48: #{tpu_custom_call.1} parent=31 // pred_fallthru
          _
        %v346 = vld [vmem:[#allocation2] sm:$0xff]
        %v347 = vld [vmem:[#allocation2 + $0x8] sm:$0xff]
        %v348 = vld [vmem:[#allocation2 + $0x10] sm:$0xff]
        %v349 = vld [vmem:[#allocation2 + $0x18] sm:$0xff]
        %v350 = vld [vmem:[%s214] sm:$0xff]
        %v351 = vld [vmem:[%s214 + $0x8] sm:$0xff]
        %v352 = vld [vmem:[%s214 + $0x10] sm:$0xff]
        %v353 = vld [vmem:[%s214 + $0x18] sm:$0xff]
        %v354 = vld [vmem:[%s214 + $0x20] sm:$0xff]
        %v355 = vld [vmem:[%s214 + $0x28] sm:$0xff]
        %v356 = vld [vmem:[%s214 + $0x30] sm:$0xff]
        %v357 = vld [vmem:[%s214 + $0x38] sm:$0xff]
        %v358 = vld [vmem:[%s214 + $0x40] sm:$0xff]
        %v359 = vld [vmem:[%s214 + $0x48] sm:$0xff]
        %v360 = vld [vmem:[%s214 + $0x50] sm:$0xff]
        %v361 = vld [vmem:[%s214 + $0x58] sm:$0xff]
        %v362 = vld [vmem:[%s214 + $0x60] sm:$0xff]
        %v363 = vld [vmem:[%s214 + $0x68] sm:$0xff]
        %v364 = vld [vmem:[%s214 + $0x70] sm:$0xff]
        %v365 = vld [vmem:[%s214 + $0x78] sm:$0xff]
        %v366 = vld [vmem:[%s214 + $0x80] sm:$0xff]
        %v367 = vld [vmem:[%s214 + $0x88] sm:$0xff]
        %v368 = vld [vmem:[%s214 + $0x90] sm:$0xff]
        %v369 = vld [vmem:[%s214 + $0x98] sm:$0xff]
        %v370 = vld [vmem:[%s214 + $0xa0] sm:$0xff]
        %v371 = vld [vmem:[%s214 + $0xa8] sm:$0xff]
        %v372 = vld [vmem:[%s214 + $0xb0] sm:$0xff]
        %v373 = vld [vmem:[%s214 + $0xb8] sm:$0xff]
        %v374 = vld [vmem:[%s214 + $0xc0] sm:$0xff]
        %v375 = vld [vmem:[%s214 + $0xc8] sm:$0xff]
        %v376 = vld [vmem:[%s214 + $0xd0] sm:$0xff]
        %v377 = vld [vmem:[%s214 + $0xd8] sm:$0xff]
        %v378 = vld [vmem:[%s214 + $0xe0] sm:$0xff]
        %v379 = vld [vmem:[%s214 + $0xe8] sm:$0xff]
        %v380 = vld [vmem:[%s214 + $0xf0] sm:$0xff]
        %v381 = vld [vmem:[%s214 + $0xf8] sm:$0xff]
        %v386 = vunpack.c.l.b16 %v346
        %v387 = vunpack.c.h.b16 %v346
        %v388 = vunpack.c.l.b16 %v347
        %v389 = vunpack.c.h.b16 %v347
        %v390 = vunpack.c.l.b16 %v348
        %v391 = vunpack.c.h.b16 %v348
        %v392 = vunpack.c.l.b16 %v349
        %v393 = vunpack.c.h.b16 %v349
        %v394 = vpack.c.b16 %v388, %v386
        %v395 = vpack.c.b16 %v389, %v387
        %v396 = vpack.c.b16 %v392, %v390
        %v397 = vpack.c.b16 %v393, %v391
        %v434 = vunpack.c.l.b16 %v350
        %v435 = vunpack.c.h.b16 %v350
        %v436 = vunpack.c.l.b16 %v351
        %v437 = vunpack.c.h.b16 %v351
        %v438 = vunpack.c.l.b16 %v352
        %v439 = vunpack.c.h.b16 %v352
        %v440 = vunpack.c.l.b16 %v353
        %v441 = vunpack.c.h.b16 %v353
        %v442 = vunpack.c.l.b16 %v354
        %v443 = vunpack.c.h.b16 %v354
        %v444 = vunpack.c.l.b16 %v355
        %v445 = vunpack.c.h.b16 %v355
        %v446 = vunpack.c.l.b16 %v356
        %v447 = vunpack.c.h.b16 %v356
        %v448 = vunpack.c.l.b16 %v357
        %v449 = vunpack.c.h.b16 %v357
        %v450 = vunpack.c.l.b16 %v358
        %v451 = vunpack.c.h.b16 %v358
        %v452 = vunpack.c.l.b16 %v359
        %v453 = vunpack.c.h.b16 %v359
        %v454 = vunpack.c.l.b16 %v360
        %v455 = vunpack.c.h.b16 %v360
        %v456 = vunpack.c.l.b16 %v361
        %v457 = vunpack.c.h.b16 %v361
        %v458 = vunpack.c.l.b16 %v362
        %v459 = vunpack.c.h.b16 %v362
        %v460 = vunpack.c.l.b16 %v363
        %v461 = vunpack.c.h.b16 %v363
        %v462 = vunpack.c.l.b16 %v364
        %v463 = vunpack.c.h.b16 %v364
        %v464 = vunpack.c.l.b16 %v365
        %v465 = vunpack.c.h.b16 %v365
        %v466 = vunpack.c.l.b16 %v366
        %v467 = vunpack.c.h.b16 %v366
        %v468 = vunpack.c.l.b16 %v367
        %v469 = vunpack.c.h.b16 %v367
        %v470 = vunpack.c.l.b16 %v368
        %v471 = vunpack.c.h.b16 %v368
        %v472 = vunpack.c.l.b16 %v369
        %v473 = vunpack.c.h.b16 %v369
        %v474 = vunpack.c.l.b16 %v370
        %v475 = vunpack.c.h.b16 %v370
        %v476 = vunpack.c.l.b16 %v371
        %v477 = vunpack.c.h.b16 %v371
        %v478 = vunpack.c.l.b16 %v372
        %v479 = vunpack.c.h.b16 %v372
        %v480 = vunpack.c.l.b16 %v373
        %v481 = vunpack.c.h.b16 %v373
        %v482 = vunpack.c.l.b16 %v374
        %v483 = vunpack.c.h.b16 %v374
        %v484 = vunpack.c.l.b16 %v375
        %v485 = vunpack.c.h.b16 %v375
        %v486 = vunpack.c.l.b16 %v376
        %v487 = vunpack.c.h.b16 %v376
        %v488 = vunpack.c.l.b16 %v377
        %v489 = vunpack.c.h.b16 %v377
        %v490 = vunpack.c.l.b16 %v378
        %v491 = vunpack.c.h.b16 %v378
        %v492 = vunpack.c.l.b16 %v379
        %v493 = vunpack.c.h.b16 %v379
        %v494 = vunpack.c.l.b16 %v380
        %v495 = vunpack.c.h.b16 %v380
        %v496 = vunpack.c.l.b16 %v381
        %v497 = vunpack.c.h.b16 %v381
        %v498 = vpack.c.b16 %v436, %v434
        %v499 = vpack.c.b16 %v437, %v435
        %v500 = vpack.c.b16 %v440, %v438
        %v501 = vpack.c.b16 %v441, %v439
        %v502 = vpack.c.b16 %v444, %v442
        %v503 = vpack.c.b16 %v445, %v443
        %v504 = vpack.c.b16 %v448, %v446
        %v505 = vpack.c.b16 %v449, %v447
        %v506 = vpack.c.b16 %v452, %v450
        %v507 = vpack.c.b16 %v453, %v451
        %v508 = vpack.c.b16 %v456, %v454
        %v509 = vpack.c.b16 %v457, %v455
        %v510 = vpack.c.b16 %v460, %v458
        %v511 = vpack.c.b16 %v461, %v459
        %v512 = vpack.c.b16 %v464, %v462
        %v513 = vpack.c.b16 %v465, %v463
        %v514 = vpack.c.b16 %v468, %v466
        %v515 = vpack.c.b16 %v469, %v467
        %v516 = vpack.c.b16 %v472, %v470
        %v517 = vpack.c.b16 %v473, %v471
        %v518 = vpack.c.b16 %v476, %v474
        %v519 = vpack.c.b16 %v477, %v475
        %v520 = vpack.c.b16 %v480, %v478
        %v521 = vpack.c.b16 %v481, %v479
        %v522 = vpack.c.b16 %v484, %v482
        %v523 = vpack.c.b16 %v485, %v483
        %v524 = vpack.c.b16 %v488, %v486
        %v525 = vpack.c.b16 %v489, %v487
        %v526 = vpack.c.b16 %v492, %v490
        %v527 = vpack.c.b16 %v493, %v491
        %v528 = vpack.c.b16 %v496, %v494
        %v529 = vpack.c.b16 %v497, %v495
        %562 = vmatprep.subr.bf16.mxu0 %v513
        %563 = vmatpush1.bf16.msra.mxu0 %v512
        %564 = vmatprep.subr.bf16.mxu0 %v511
        %565 = vmatpush1.bf16.msra.mxu0 %v510
        %566 = vmatprep.subr.bf16.mxu0 %v509
        %567 = vmatpush1.bf16.msra.mxu0 %v508
        %568 = vmatprep.subr.bf16.mxu0 %v507
        %569 = vmatpush1.bf16.msra.mxu0 %v506
        %570 = vmatprep.subr.bf16.mxu0 %v505
        %571 = vmatpush1.bf16.msra.mxu0 %v504
        %572 = vmatprep.subr.bf16.mxu0 %v503
        %573 = vmatpush1.bf16.msra.mxu0 %v502
        %574 = vmatprep.subr.bf16.mxu0 %v501
        %575 = vmatpush1.bf16.msra.mxu0 %v500
        %576 = vmatprep.subr.bf16.mxu0 %v499
        %577 = vmatpush1.bf16.msra.mxu0 %v498
        %578 = vmatprep.subr.bf16.mxu0 %v529
        %579 = vmatpush2.bf16.msra.mxu0 %v528
        %580 = vmatprep.subr.bf16.mxu0 %v527
        %581 = vmatpush2.bf16.msra.mxu0 %v526
        %582 = vmatprep.subr.bf16.mxu0 %v525
        %583 = vmatpush2.bf16.msra.mxu0 %v524
        %584 = vmatprep.subr.bf16.mxu0 %v523
        %585 = vmatpush2.bf16.msra.mxu0 %v522
        %586 = vmatprep.subr.bf16.mxu0 %v521
        %587 = vmatpush2.bf16.msra.mxu0 %v520
        %588 = vmatprep.subr.bf16.mxu0 %v519
        %589 = vmatpush2.bf16.msra.mxu0 %v518
        %590 = vmatprep.subr.bf16.mxu0 %v517
        %591 = vmatpush2.bf16.msra.mxu0 %v516
        %592 = vmatprep.subr.bf16.mxu0 %v515
        %593 = vmatpush2.bf16.msra.mxu0 %v514
        %594 = vmatprep.mubr.bf16.mxu0 %v395
        %595 = vmatmul.mubr.bf16.gmra.mxu0 %v394
        %v596 = vpop.f32.mrf.mxu0
        %v597 = vadd.f32 0.0, %v596
        %v598 = vpop.f32.mrf.mxu0
        %v599 = vadd.f32 0.0, %v598
        %v600 = vpop.f32.mrf.mxu0
        %v601 = vadd.f32 0.0, %v600
        %v602 = vpop.f32.mrf.mxu0
        %v603 = vadd.f32 0.0, %v602
        %604 = vmatprep.mubr.bf16.mxu0 %v397
        %605 = vmatmul.mubr.bf16.gmra.mxu0 %v396
        %v606 = vpop.f32.mrf.mxu0
        %v607 = vadd.f32 0.0, %v606
        %v608 = vpop.f32.mrf.mxu0
        %v609 = vadd.f32 0.0, %v608
        %v610 = vpop.f32.mrf.mxu0
        %v611 = vadd.f32 0.0, %v610
        %v612 = vpop.f32.mrf.mxu0
        %v613 = vadd.f32 0.0, %v612
        %614 = vdwg.mxu0
        %v615 = vpack.c.bf16 %v601, %v597
        %v616 = vpack.c.bf16 %v603, %v599
        %v617 = vpack.c.bf16 %v611, %v607
        %v618 = vpack.c.bf16 %v613, %v609
        %v623 = vunpack.c.l.b16 %v615
        %v624 = vunpack.c.l.b16 %v616
        %v625 = vunpack.c.h.b16 %v615
        %v626 = vunpack.c.h.b16 %v616
        %v627 = vunpack.c.l.b16 %v617
        %v628 = vunpack.c.l.b16 %v618
        %v629 = vunpack.c.h.b16 %v617
        %v630 = vunpack.c.h.b16 %v618
        %v631 = vpack.c.b16 %v624, %v623
        %v632 = vpack.c.b16 %v626, %v625
        %v633 = vpack.c.b16 %v628, %v627
        %v634 = vpack.c.b16 %v630, %v629
        %639 = vst [vmem:[%s236] sm:$0xff] %v631
        %640 = vst [vmem:[%s236 + $0x8] sm:$0xff] %v632
        %641 = vst [vmem:[%s236 + $0x10] sm:$0xff] %v633
        %642 = vst [vmem:[%s236 + $0x18] sm:$0xff] %v634
        %s643 = sand.u32 %s114, 1
        %s644 = scalar_lea.sflag [#allocation5], %s643
        %s645 = sand.u32 %s114, 1
        %s646 = smul.addr %s645, 32
        %s647 = scalar_lea.vmem [#allocation9], %s646
        // Predicated region
        $region49: #{tpu_custom_call.1} parent=31 // pred_check
          %p648 = pneg %p124
        $region50: #{tpu_custom_call.1} parent=31 // pred_check_branch
          %650 = sbr.rel (%p648) target = $region52
        $region51: #{tpu_custom_call.1} parent=31 // pred_region
          %s651 = smul.u32 4, %s23
          %s652 = smul.u32 2, %s24
          %s654 = ssub.s32 512, 512
          %655 = vsyncadd %s644, %s654
          %s656 = smul.addr %s651, 4
          %s657 = sadd.s32 %s652, %s656
          %s658 = smul.addr %s657, 64
          %s659 = scalar_lea.hbm %s3, %s658
          %s660 = sshll.u32 %s647, 4
          %s661 = int_to_ptr.vmem [resolvable:$true] %s660
          %666 = dma.vmem_to_hbm [thread:$0]  %s661, 512, %s659, %s644, 128, 256, 8
        $region52: #{tpu_custom_call.1} parent=31 // pred_fallthru
          _
      $region32: #{tpu_custom_call.1} parent=5 // pred_fallthru
        _
      %p667 = scmp.le.s32.totalorder 2, %s14
      // Predicated region
      $region53: #{tpu_custom_call.1} parent=5 // pred_check
        %p668 = pneg %p667
      $region54: #{tpu_custom_call.1} parent=5 // pred_check_branch
        %670 = sbr.rel (%p668) target = $region56
      $region55: #{tpu_custom_call.1} parent=5 // pred_region
        %s671 = ssub.s32 %s14, 2
        // Predicated region
        $region57: #{tpu_custom_call.1} parent=55 // pred_check
          %p672 = pneg %p130
        $region58: #{tpu_custom_call.1} parent=55 // pred_check_branch
          %674 = sbr.rel (%p672) target = $region60
        $region59: #{tpu_custom_call.1} parent=55 // pred_region
          %s675 = sand.u32 %s115, 1
          %s676 = scalar_lea.sflag [#allocation5], %s675
          %s677 = sand.u32 %s115, 1
          %s678 = smul.addr %s677, 32
          %s679 = scalar_lea.vmem [#allocation9], %s678
          %680 = dma.done %s676, 512
        $region60: #{tpu_custom_call.1} parent=55 // pred_fallthru
          _
      $region56: #{tpu_custom_call.1} parent=5 // pred_fallthru
        _
    $region6: #{tpu_custom_call.1} parent=1 // loop_footer
      %s18 = sadd.s32 1, %s14
    $region7: #{tpu_custom_call.1} parent=1 // loop_footer_branch
      %13 = sbr.rel target = $region3
    $region8: #{tpu_custom_call.1} parent=1 // loop_exit
      _
    %681 = vsyncpa [#allocation4], 1
    %s682 = scalar_lea.sflag [#allocation4], 1
    %683 = vsyncpa %s682, 1
    %684 = vsyncpa [#allocation7], 1
    %685 = vsyncpa [#allocation5], 1
    %s686 = scalar_lea.sflag [#allocation5], 1
    %687 = vsyncpa %s686, 1

</llo_original>
